<compile_context>
chip_gen: v6e
topology: v6e:2x2x1
jax: 0.10.0
libtpu: 0.0.40
codegen_flags: <defaults>
</compile_context>

<pallas_src>
import functools

import jax
import jax.numpy as jnp
from jax import lax
from jax.experimental import pallas as pl
from jax.experimental.pallas import tpu as pltpu


BN_EPS = 1e-5


def _round_up(n, m):
    return ((n + m - 1) // m) * m


def _encoder_kernel(x_ref, w1_ref, b1_ref, w2_ref, b2_ref, wh_ref, bh_ref,
                    out_ref, acc_ref, *, num_topics):
    k = pl.program_id(0)

    # ---- fc1: K-tiled bf16 matmul, f32 accumulation ----
    @pl.when(k == 0)
    def _():
        acc_ref[...] = jnp.zeros_like(acc_ref)

    acc_ref[...] += jnp.dot(x_ref[...], w1_ref[...],
                            preferred_element_type=jnp.float32)

    # ---- tail: runs once, on the last K step ----
    @pl.when(k == pl.num_programs(0) - 1)
    def _():
        h = jax.nn.softplus(acc_ref[...] + b1_ref[...])

        # fc2 + softplus (bf16 operands, f32 accumulate)
        h = jnp.dot(h.astype(jnp.bfloat16), w2_ref[...],
                    preferred_element_type=jnp.float32) + b2_ref[...]
        h = jax.nn.softplus(h)

        # dropout: eval mode -> identity

        # fused head: [fcmu | fclv] in one lane-dense matmul
        z = jnp.dot(h.astype(jnp.bfloat16), wh_ref[...],
                    preferred_element_type=jnp.float32) + bh_ref[...]

        # BatchNorm1d(affine=False), training-mode batch stats, biased var,
        # single-pass E[z^2] - m^2 (f32).
        m = jnp.mean(z, axis=0, keepdims=True)
        ex2 = jnp.mean(z * z, axis=0, keepdims=True)
        var = jnp.maximum(ex2 - m * m, 0.0)
        zn = (z - m) * lax.rsqrt(var + BN_EPS)

        # columns [0, T)      -> logtheta_loc (BN(mu))
        # columns [T, 2T)     -> logtheta_scale = exp(0.5 * BN(logvar))
        # columns [2T, P2T)   -> zero padding (sliced away in the wrapper)
        col = lax.broadcasted_iota(jnp.int32, zn.shape, 1)
        out_ref[...] = jnp.where(col < num_topics, zn, jnp.exp(0.5 * zn))


def encoder_forward(x, params, *, tk=128):
    """x: (B, vocab_size) float32. params: dict of (in, out) weights."""
    B, V = x.shape
    H = params["w1"].shape[1]
    T = params["wmu"].shape[1]

    Vp = _round_up(V, tk)       # vocab padded to the K tile
    Hp = _round_up(H, 128)      # hidden padded to full lane width
    P2T = _round_up(2 * T, 128)  # packed head output, lane-dense

    bf16 = jnp.bfloat16

    # Zero-pad + cast matmul operands to bf16 (biases stay f32).
    x_p = jnp.pad(x, ((0, 0), (0, Vp - V))).astype(bf16)
    w1 = jnp.pad(params["w1"], ((0, Vp - V), (0, Hp - H))).astype(bf16)
    b1 = jnp.pad(params["b1"], ((0, 0), (0, Hp - H)))
    w2 = jnp.pad(params["w2"], ((0, Hp - H), (0, Hp - H))).astype(bf16)
    b2 = jnp.pad(params["b2"], ((0, 0), (0, Hp - H)))
    wh = jnp.concatenate([params["wmu"], params["wlv"]], axis=1)
    wh = jnp.pad(wh, ((0, Hp - H), (0, P2T - 2 * T))).astype(bf16)
    bh = jnp.concatenate([params["bmu"], params["blv"]], axis=1)
    bh = jnp.pad(bh, ((0, 0), (0, P2T - 2 * T)))

    kt = Vp // tk

    bytes_accessed = (
        x_p.size * 2 + w1.size * 2 + w2.size * 2 + wh.size * 2
        + (b1.size + b2.size + bh.size) * 4 + B * P2T * 4
    )

    packed = pl.pallas_call(
        functools.partial(_encoder_kernel, num_topics=T),
        out_shape=jax.ShapeDtypeStruct((B, P2T), jnp.float32),
        grid_spec=pltpu.PrefetchScalarGridSpec(
            num_scalar_prefetch=0,
            grid=(kt,),
            in_specs=[
                pl.BlockSpec((B, tk), lambda k: (0, k)),    # x tile
                pl.BlockSpec((tk, Hp), lambda k: (k, 0)),   # w1 tile
                pl.BlockSpec((1, Hp), lambda k: (0, 0)),    # b1 (resident)
                pl.BlockSpec((Hp, Hp), lambda k: (0, 0)),   # w2 (resident)
                pl.BlockSpec((1, Hp), lambda k: (0, 0)),    # b2 (resident)
                pl.BlockSpec((Hp, P2T), lambda k: (0, 0)),  # fused head W
                pl.BlockSpec((1, P2T), lambda k: (0, 0)),   # fused head b
            ],
            out_specs=pl.BlockSpec((B, P2T), lambda k: (0, 0)),
            scratch_shapes=[pltpu.VMEM((B, Hp), jnp.float32)],
        ),
        compiler_params=pltpu.CompilerParams(
            dimension_semantics=("arbitrary",),      # K axis is a reduction
            vmem_limit_bytes=32 * 1024 * 1024,
        ),
        cost_estimate=pl.CostEstimate(
            flops=2 * B * (Vp * Hp + Hp * Hp + Hp * P2T),
            transcendentals=B * (2 * Hp + P2T),
            bytes_accessed=bytes_accessed,
        ),
    )(x_p, w1, b1, w2, b2, wh, bh)

    loc = packed[:, :T]
    scale = packed[:, T:2 * T]
    return loc, scale


def init_params(key, vocab_size, hidden, num_topics):
    """Deterministic synthetic parameters. Weights are (in, out)."""
    ks = jax.random.split(key, 8)
    s = 0.05
    return {
        "w1": jax.random.normal(ks[0], (vocab_size, hidden), jnp.float32) * s,
        "b1": jax.random.normal(ks[1], (1, hidden), jnp.float32) * s,
        "w2": jax.random.normal(ks[2], (hidden, hidden), jnp.float32) * s,
        "b2": jax.random.normal(ks[3], (1, hidden), jnp.float32) * s,
        "wmu": jax.random.normal(ks[4], (hidden, num_topics), jnp.float32) * s,
        "bmu": jax.random.normal(ks[5], (1, num_topics), jnp.float32) * s,
        "wlv": jax.random.normal(ks[6], (hidden, num_topics), jnp.float32) * s,
        "blv": jax.random.normal(ks[7], (1, num_topics), jnp.float32) * s,
    }


def _reference(x, p):
    """Pure-JAX reference mirroring the kernel's bf16-operand / f32-acc math."""
    bf = jnp.bfloat16

    def mm(a, w):
        return jnp.dot(a.astype(bf), w.astype(bf),
                       preferred_element_type=jnp.float32)

    h = jax.nn.softplus(mm(x, p["w1"]) + p["b1"])
    h = jax.nn.softplus(mm(h, p["w2"]) + p["b2"])
    mu = mm(h, p["wmu"]) + p["bmu"]
    lv = mm(h, p["wlv"]) + p["blv"]

    def bn(z):
        m = jnp.mean(z, axis=0, keepdims=True)
        v = jnp.mean((z - m) ** 2, axis=0, keepdims=True)
        return (z - m) / jnp.sqrt(v + BN_EPS)

    return bn(mu), jnp.exp(0.5 * bn(lv))


if __name__ == "__main__":
    # Small shapes consistent with the module's forward.
    batch, vocab_size, hidden, num_topics = 8, 256, 128, 32

    key = jax.random.PRNGKey(0)
    k_x, k_p = jax.random.split(key)

    x = jax.random.uniform(k_x, (batch, vocab_size), jnp.float32)
    params = init_params(k_p, vocab_size, hidden, num_topics)

    loc, scale = jax.jit(encoder_forward)(x, params)
    jax.block_until_ready((loc, scale))

    assert loc.shape == (batch, num_topics)
    assert scale.shape == (batch, num_topics)

    # sanity check against pure-JAX reference
    loc_ref, scale_ref = _reference(x, params)
    assert jnp.allclose(loc, loc_ref, atol=2e-3, rtol=2e-3), \
        float(jnp.max(jnp.abs(loc - loc_ref)))
    assert jnp.allclose(scale, scale_ref, atol=2e-3, rtol=2e-3), \
        float(jnp.max(jnp.abs(scale - scale_ref)))

    print("KERNEL_OK")
</pallas_src>

<mosaic_0001>
module attributes {stable_mosaic.version = 11 : i64} {
  func.func @_encoder_kernel(%arg0: i32, %arg1: memref<8x128xbf16, #tpu.memory_space<vmem>>, %arg2: memref<128x128xbf16, #tpu.memory_space<vmem>>, %arg3: memref<1x128xf32, #tpu.memory_space<vmem>>, %arg4: memref<128x128xbf16, #tpu.memory_space<vmem>>, %arg5: memref<1x128xf32, #tpu.memory_space<vmem>>, %arg6: memref<128x128xbf16, #tpu.memory_space<vmem>>, %arg7: memref<1x128xf32, #tpu.memory_space<vmem>>, %arg8: memref<8x128xf32, #tpu.memory_space<vmem>>, %arg9: memref<8x128xf32, #tpu.memory_space<vmem>>) attributes {dimension_semantics = [#tpu.dimension_semantics<arbitrary>], iteration_bounds = array<i64: 2>, scalar_prefetch = 0 : i64, scratch_operands = 1 : i64, tpu.core_type = #tpu.core_type<tc>, window_params = [{transform_indices = @transform_0, window_bounds = array<i64: 8, 128>}, {transform_indices = @transform_1, window_bounds = array<i64: 128, 128>}, {pipeline_mode = #tpu.pipeline_mode<synchronous>, transform_indices = @transform_2, window_bounds = array<i64: 1, 128>}, {pipeline_mode = #tpu.pipeline_mode<synchronous>, transform_indices = @transform_3, window_bounds = array<i64: 128, 128>}, {pipeline_mode = #tpu.pipeline_mode<synchronous>, transform_indices = @transform_4, window_bounds = array<i64: 1, 128>}, {pipeline_mode = #tpu.pipeline_mode<synchronous>, transform_indices = @transform_5, window_bounds = array<i64: 128, 128>}, {pipeline_mode = #tpu.pipeline_mode<synchronous>, transform_indices = @transform_6, window_bounds = array<i64: 1, 128>}, {pipeline_mode = #tpu.pipeline_mode<synchronous>, transform_indices = @transform_7, window_bounds = array<i64: 8, 128>}]} {
    %c0_i32 = arith.constant 0 : i32
    %0 = arith.cmpi eq, %arg0, %c0_i32 : i32
    %1 = arith.extui %0 : i1 to i32
    %c0_i32_0 = arith.constant 0 : i32
    %2 = arith.cmpi ne, %1, %c0_i32_0 : i32
    scf.if %2 {
      %cst_9 = arith.constant 0.000000e+00 : f32
      %12 = vector.broadcast %cst_9 : f32 to vector<8x128xf32>
      %c0_10 = arith.constant 0 : index
      %c0_11 = arith.constant 0 : index
      %13 = vector.load %arg9[%c0_10, %c0_11] : memref<8x128xf32, #tpu.memory_space<vmem>>, vector<8x128xf32>
      tpu.vector_store %arg9[%c0_10, %c0_11], %12 {strides = array<i32>} : memref<8x128xf32, #tpu.memory_space<vmem>>, vector<8x128xf32>,
    } else {
    }
    %c0 = arith.constant 0 : index
    %c0_1 = arith.constant 0 : index
    %3 = vector.load %arg9[%c0, %c0_1] : memref<8x128xf32, #tpu.memory_space<vmem>>, vector<8x128xf32>
    %c0_2 = arith.constant 0 : index
    %c0_3 = arith.constant 0 : index
    %4 = vector.load %arg1[%c0_2, %c0_3] : memref<8x128xbf16, #tpu.memory_space<vmem>>, vector<8x128xbf16>
    %c0_4 = arith.constant 0 : index
    %c0_5 = arith.constant 0 : index
    %5 = vector.load %arg2[%c0_4, %c0_5] : memref<128x128xbf16, #tpu.memory_space<vmem>>, vector<128x128xbf16>
    %cst = arith.constant dense<0.000000e+00> : vector<8x128xf32>
    %6 = tpu.matmul %4, %5, %cst {dimension_numbers = #tpu.dot_dimension_numbers<[1], [0], [0], [1], [0, 0, 1, 1], [], []>} : vector<8x128xbf16>, vector<128x128xbf16>, vector<8x128xf32> -> vector<8x128xf32>
    %7 = arith.addf %3, %6 : vector<8x128xf32>
    %c0_6 = arith.constant 0 : index
    %c0_7 = arith.constant 0 : index
    %8 = vector.load %arg9[%c0_6, %c0_7] : memref<8x128xf32, #tpu.memory_space<vmem>>, vector<8x128xf32>
    tpu.vector_store %arg9[%c0_6, %c0_7], %7 {strides = array<i32>} : memref<8x128xf32, #tpu.memory_space<vmem>>, vector<8x128xf32>,
    %c1_i32 = arith.constant 1 : i32
    %9 = arith.cmpi eq, %arg0, %c1_i32 : i32
    %10 = arith.extui %9 : i1 to i32
    %c0_i32_8 = arith.constant 0 : i32
    %11 = arith.cmpi ne, %10, %c0_i32_8 : i32
    scf.if %11 {
      %c0_9 = arith.constant 0 : index
      %c0_10 = arith.constant 0 : index
      %12 = vector.load %arg9[%c0_9, %c0_10] : memref<8x128xf32, #tpu.memory_space<vmem>>, vector<8x128xf32>
      %c0_11 = arith.constant 0 : index
      %c0_12 = arith.constant 0 : index
      %13 = vector.load %arg3[%c0_11, %c0_12] : memref<1x128xf32, #tpu.memory_space<vmem>>, vector<1x128xf32>
      %14 = vector.broadcast %13 : vector<1x128xf32> to vector<8x128xf32>
      %15 = arith.addf %12, %14 : vector<8x128xf32>
      %cst_13 = arith.constant 0.000000e+00 : f32
      %16 = vector.broadcast %cst_13 : f32 to vector<8x128xf32>
      %17 = arith.maximumf %15, %16 : vector<8x128xf32>
      %18 = vector.broadcast %cst_13 : f32 to vector<8x128xf32>
      %19 = arith.subf %15, %18 : vector<8x128xf32>
      %20 = arith.cmpf one, %19, %19 : vector<8x128xf32>
      %21 = vector.broadcast %cst_13 : f32 to vector<8x128xf32>
      %22 = arith.addf %15, %21 : vector<8x128xf32>
      %23 = math.absf %19 : vector<8x128xf32>
      %cst_14 = arith.constant 0.000000e+00 : f32
      %24 = vector.broadcast %cst_14 : f32 to vector<8x128xf32>
      %25 = arith.subf %24, %23 : vector<8x128xf32>
      %26 = math.exp %25 : vector<8x128xf32>
      %27 = math.log1p %26 : vector<8x128xf32>
      %28 = arith.addf %17, %27 : vector<8x128xf32>
      %29 = arith.select %20, %22, %28 : vector<8x128xi1>, vector<8x128xf32>
      %30 = arith.truncf %29 : vector<8x128xf32> to vector<8x128xbf16>
      %c0_15 = arith.constant 0 : index
      %c0_16 = arith.constant 0 : index
      %31 = vector.load %arg4[%c0_15, %c0_16] : memref<128x128xbf16, #tpu.memory_space<vmem>>, vector<128x128xbf16>
      %cst_17 = arith.constant dense<0.000000e+00> : vector<8x128xf32>
      %32 = tpu.matmul %30, %31, %cst_17 {dimension_numbers = #tpu.dot_dimension_numbers<[1], [0], [0], [1], [0, 0, 1, 1], [], []>} : vector<8x128xbf16>, vector<128x128xbf16>, vector<8x128xf32> -> vector<8x128xf32>
      %c0_18 = arith.constant 0 : index
      %c0_19 = arith.constant 0 : index
      %33 = vector.load %arg5[%c0_18, %c0_19] : memref<1x128xf32, #tpu.memory_space<vmem>>, vector<1x128xf32>
      %34 = vector.broadcast %33 : vector<1x128xf32> to vector<8x128xf32>
      %35 = arith.addf %32, %34 : vector<8x128xf32>
      %cst_20 = arith.constant 0.000000e+00 : f32
      %36 = vector.broadcast %cst_20 : f32 to vector<8x128xf32>
      %37 = arith.maximumf %35, %36 : vector<8x128xf32>
      %38 = vector.broadcast %cst_20 : f32 to vector<8x128xf32>
      %39 = arith.subf %35, %38 : vector<8x128xf32>
      %40 = arith.cmpf one, %39, %39 : vector<8x128xf32>
      %41 = vector.broadcast %cst_20 : f32 to vector<8x128xf32>
      %42 = arith.addf %35, %41 : vector<8x128xf32>
      %43 = math.absf %39 : vector<8x128xf32>
      %cst_21 = arith.constant 0.000000e+00 : f32
      %44 = vector.broadcast %cst_21 : f32 to vector<8x128xf32>
      %45 = arith.subf %44, %43 : vector<8x128xf32>
      %46 = math.exp %45 : vector<8x128xf32>
      %47 = math.log1p %46 : vector<8x128xf32>
      %48 = arith.addf %37, %47 : vector<8x128xf32>
      %49 = arith.select %40, %42, %48 : vector<8x128xi1>, vector<8x128xf32>
      %50 = arith.truncf %49 : vector<8x128xf32> to vector<8x128xbf16>
      %c0_22 = arith.constant 0 : index
      %c0_23 = arith.constant 0 : index
      %51 = vector.load %arg6[%c0_22, %c0_23] : memref<128x128xbf16, #tpu.memory_space<vmem>>, vector<128x128xbf16>
      %cst_24 = arith.constant dense<0.000000e+00> : vector<8x128xf32>
      %52 = tpu.matmul %50, %51, %cst_24 {dimension_numbers = #tpu.dot_dimension_numbers<[1], [0], [0], [1], [0, 0, 1, 1], [], []>} : vector<8x128xbf16>, vector<128x128xbf16>, vector<8x128xf32> -> vector<8x128xf32>
      %c0_25 = arith.constant 0 : index
      %c0_26 = arith.constant 0 : index
      %53 = vector.load %arg7[%c0_25, %c0_26] : memref<1x128xf32, #tpu.memory_space<vmem>>, vector<1x128xf32>
      %54 = vector.broadcast %53 : vector<1x128xf32> to vector<8x128xf32>
      %55 = arith.addf %52, %54 : vector<8x128xf32>
      %cst_27 = arith.constant dense<0.000000e+00> : vector<128xf32>
      %56 = vector.multi_reduction <add>, %55, %cst_27 [0] : vector<8x128xf32> to vector<128xf32>
      %57 = vector.shape_cast %56 : vector<128xf32> to vector<1x128xf32>
      %cst_28 = arith.constant 8.000000e+00 : f32
      %58 = vector.broadcast %cst_28 : f32 to vector<1x128xf32>
      %59 = arith.divf %57, %58 : vector<1x128xf32>
      %60 = arith.mulf %55, %55 : vector<8x128xf32>
      %cst_29 = arith.constant dense<0.000000e+00> : vector<128xf32>
      %61 = vector.multi_reduction <add>, %60, %cst_29 [0] : vector<8x128xf32> to vector<128xf32>
      %62 = vector.shape_cast %61 : vector<128xf32> to vector<1x128xf32>
      %cst_30 = arith.constant 8.000000e+00 : f32
      %63 = vector.broadcast %cst_30 : f32 to vector<1x128xf32>
      %64 = arith.divf %62, %63 : vector<1x128xf32>
      %65 = arith.mulf %59, %59 : vector<1x128xf32>
      %66 = arith.subf %64, %65 : vector<1x128xf32>
      %cst_31 = arith.constant 0.000000e+00 : f32
      %67 = vector.broadcast %cst_31 : f32 to vector<1x128xf32>
      %68 = arith.maximumf %66, %67 : vector<1x128xf32>
      %69 = vector.broadcast %59 : vector<1x128xf32> to vector<8x128xf32>
      %70 = arith.subf %55, %69 : vector<8x128xf32>
      %cst_32 = arith.constant 9.99999974E-6 : f32
      %71 = vector.broadcast %cst_32 : f32 to vector<1x128xf32>
      %72 = arith.addf %68, %71 : vector<1x128xf32>
      %73 = math.rsqrt %72 : vector<1x128xf32>
      %74 = vector.broadcast %73 : vector<1x128xf32> to vector<8x128xf32>
      %75 = arith.mulf %70, %74 : vector<8x128xf32>
      %76 = tpu.iota {dimensions = array<i32: 1>} : vector<8x128xi32>
      %c32_i32 = arith.constant 32 : i32
      %77 = vector.broadcast %c32_i32 : i32 to vector<8x128xi32>
      %78 = arith.cmpi slt, %76, %77 : vector<8x128xi32>
      %cst_33 = arith.constant 5.000000e-01 : f32
      %79 = vector.broadcast %cst_33 : f32 to vector<8x128xf32>
      %80 = arith.mulf %79, %75 : vector<8x128xf32>
      %81 = math.exp %80 : vector<8x128xf32>
      %82 = arith.select %78, %75, %81 : vector<8x128xi1>, vector<8x128xf32>
      %c0_34 = arith.constant 0 : index
      %c0_35 = arith.constant 0 : index
      %83 = vector.load %arg8[%c0_34, %c0_35] : memref<8x128xf32, #tpu.memory_space<vmem>>, vector<8x128xf32>
      tpu.vector_store %arg8[%c0_34, %c0_35], %82 {strides = array<i32>} : memref<8x128xf32, #tpu.memory_space<vmem>>, vector<8x128xf32>,
    } else {
    }
    return
  }
  func.func @transform_0(%arg0: i32) -> (i32, i32) {
    %c0_i32 = arith.constant 0 : i32
    %c0_i32_0 = arith.constant 0 : i32
    return %c0_i32, %arg0 : i32, i32
  }
  func.func @transform_1(%arg0: i32) -> (i32, i32) {
    %c0_i32 = arith.constant 0 : i32
    %c0_i32_0 = arith.constant 0 : i32
    return %arg0, %c0_i32 : i32, i32
  }
  func.func @transform_2(%arg0: i32) -> (i32, i32) {
    %c0_i32 = arith.constant 0 : i32
    %c0_i32_0 = arith.constant 0 : i32
    %c0_i32_1 = arith.constant 0 : i32
    return %c0_i32, %c0_i32_0 : i32, i32
  }
  func.func @transform_3(%arg0: i32) -> (i32, i32) {
    %c0_i32 = arith.constant 0 : i32
    %c0_i32_0 = arith.constant 0 : i32
    %c0_i32_1 = arith.constant 0 : i32
    return %c0_i32, %c0_i32_0 : i32, i32
  }
  func.func @transform_4(%arg0: i32) -> (i32, i32) {
    %c0_i32 = arith.constant 0 : i32
    %c0_i32_0 = arith.constant 0 : i32
    %c0_i32_1 = arith.constant 0 : i32
    return %c0_i32, %c0_i32_0 : i32, i32
  }
  func.func @transform_5(%arg0: i32) -> (i32, i32) {
    %c0_i32 = arith.constant 0 : i32
    %c0_i32_0 = arith.constant 0 : i32
    %c0_i32_1 = arith.constant 0 : i32
    return %c0_i32, %c0_i32_0 : i32, i32
  }
  func.func @transform_6(%arg0: i32) -> (i32, i32) {
    %c0_i32 = arith.constant 0 : i32
    %c0_i32_0 = arith.constant 0 : i32
    %c0_i32_1 = arith.constant 0 : i32
    return %c0_i32, %c0_i32_0 : i32, i32
  }
  func.func @transform_7(%arg0: i32) -> (i32, i32) {
    %c0_i32 = arith.constant 0 : i32
    %c0_i32_0 = arith.constant 0 : i32
    %c0_i32_1 = arith.constant 0 : i32
    return %c0_i32, %c0_i32_0 : i32, i32
  }
}

</mosaic_0001>

<llo_original>
// kernel: encoder_forward.1
$region0: #{encoder_forward.1}
  #allocation0 [shape = 'u32[]', space=smem, size = 0x4, offset = 0x4, fixed_abs, tag = 'smem constant byte address 0x4 - core index']
  #allocation1 [shape = 'u32[144,128]{1,0:T(1,128)}', space=vmem, size = 0x12000, scoped, tag = 'internal scratch']
  #allocation2 [shape = 'f32[8,128]{1,0:T(8,128)}', space=vmem, size = 0x1000, scoped, tag = 'scratch operand']
  %s0 = inlined_call_operand.vmem [shape: bf16[8,256], index: 0, kind: input, shape index: {}]
  %s1 = inlined_call_operand.vmem [shape: bf16[256,128], index: 1, kind: input, shape index: {}]
  %s2 = inlined_call_operand.vmem [shape: f32[1,128], index: 2, kind: input, shape index: {}]
  %s3 = inlined_call_operand.vmem [shape: bf16[128,128], index: 3, kind: input, shape index: {}]
  %s4 = inlined_call_operand.vmem [shape: f32[1,128], index: 4, kind: input, shape index: {}]
  %s5 = inlined_call_operand.vmem [shape: bf16[128,128], index: 5, kind: input, shape index: {}]
  %s6 = inlined_call_operand.vmem [shape: f32[1,128], index: 6, kind: input, shape index: {}]
  %s7 = inlined_call_operand.vmem [shape: f32[8,128], index: 7, kind: output, shape index: {}]
  %s8 = sld [smem:[#allocation0]]
  $region69: #{encoder_forward.1} parent=0
    _
  %s10 = ssub.s32 1, %s8
  %s11 = scalar_select 0, %s10, %s8
  loop: start=0, step=1, limit=4
  $region2: #{encoder_forward.1} parent=0 // loop_pre_header
    _
  $region3: #{encoder_forward.1} parent=0 // loop_header
    %s13 = sphi 0, %s17
    %p14 = scmp.ge.s32.totalorder %s13, 4
    %s23 = sphi 0, %s25
    %s26 = sphi 0, %s23
    %s27 = sphi 0, %s26
    %s43 = sphi 0, %s27
    %s49 = sphi 0, %s51
    %s52 = sphi 0, %s49
    %s53 = sphi 0, %s52
    %s69 = sphi 0, %s53
    %s73 = sphi 0, %s73
    %s75 = sphi 0, %s73
    %s76 = sphi 0, %s75
    %s90 = sphi 0, %s76
    %s94 = sphi 0, %s94
    %s96 = sphi 0, %s94
    %s97 = sphi 0, %s96
    %s111 = sphi 0, %s97
    %s115 = sphi 0, %s115
    %s117 = sphi 0, %s115
    %s118 = sphi 0, %s117
    %s132 = sphi 0, %s118
    %s136 = sphi 0, %s136
    %s138 = sphi 0, %s136
    %s139 = sphi 0, %s138
    %s153 = sphi 0, %s139
    %s157 = sphi 0, %s157
    %s159 = sphi 0, %s157
    %s160 = sphi 0, %s159
    %s174 = sphi 0, %s160
    %s178 = sphi 0, %s178
    %s180 = sphi 0, %s178
    %s181 = sphi 0, %s180
    %s195 = sphi 0, %s181
  $region4: #{encoder_forward.1} parent=0 // loop_header_branch
    %16 = sbr.rel (%p14) target = $region8
  $region5: #{encoder_forward.1} parent=0 // loop_body
    %s18 = ssub.s32 %s13, 1
    %s19 = ssub.s32 %s13, 2
    %s20 = sadd.s32 %s13, 1
    %s21 = ssub.s32 %s13, %s20
    %p22 = scmp.eq.s32.totalorder %s21, 0
    %s24 = sadd.s32 %s23, 1
    %s25 = scalar_select %p22, %s23, %s24
    %p28 = pneg %p22
    %p29 = scmp.eq.s32.totalorder %s13, 1
    %p30 = por %p28, %p29
    %p31 = scmp.ne.s32.totalorder %s23, %s26
    %p32 = scmp.eq.s32.totalorder %s13, 0
    %p33 = por %p31, %p32
    %p34 = scmp.ne.s32.totalorder %s23, %s26
    %p35 = scmp.eq.s32.totalorder %s18, 1
    %p36 = por %p34, %p35
    %p37 = scmp.ne.s32.totalorder %s26, %s27
    %p38 = scmp.eq.s32.totalorder %s18, 0
    %p39 = por %p37, %p38
    %p40 = scmp.ne.s32.totalorder %s26, %s27
    %p41 = scmp.eq.s32.totalorder %s19, 1
    %p42 = por %p40, %p41
    %p44 = scmp.ne.s32.totalorder %s27, %s43
    %p45 = scmp.eq.s32.totalorder %s19, 0
    %p46 = por %p44, %p45
    %s47 = ssub.s32 %s13, %s20
    %p48 = scmp.eq.s32.totalorder %s47, 0
    %s50 = sadd.s32 %s49, 1
    %s51 = scalar_select %p48, %s49, %s50
    %p54 = pneg %p48
    %p55 = scmp.eq.s32.totalorder %s13, 1
    %p56 = por %p54, %p55
    %p57 = scmp.ne.s32.totalorder %s49, %s52
    %p58 = scmp.eq.s32.totalorder %s13, 0
    %p59 = por %p57, %p58
    %p60 = scmp.ne.s32.totalorder %s49, %s52
    %p61 = scmp.eq.s32.totalorder %s18, 1
    %p62 = por %p60, %p61
    %p63 = scmp.ne.s32.totalorder %s52, %s53
    %p64 = scmp.eq.s32.totalorder %s18, 0
    %p65 = por %p63, %p64
    %p66 = scmp.ne.s32.totalorder %s52, %s53
    %p67 = scmp.eq.s32.totalorder %s19, 1
    %p68 = por %p66, %p67
    %p70 = scmp.ne.s32.totalorder %s53, %s69
    %p71 = scmp.eq.s32.totalorder %s19, 0
    %p72 = por %p70, %p71
    %s74 = sadd.s32 %s73, 1
    %p77 = scmp.eq.s32.totalorder %s13, 1
    %p78 = scmp.ne.s32.totalorder %s73, %s75
    %p79 = scmp.eq.s32.totalorder %s13, 0
    %p80 = por %p78, %p79
    %p81 = scmp.ne.s32.totalorder %s73, %s75
    %p82 = scmp.eq.s32.totalorder %s18, 1
    %p83 = por %p81, %p82
    %p84 = scmp.ne.s32.totalorder %s75, %s76
    %p85 = scmp.eq.s32.totalorder %s18, 0
    %p86 = por %p84, %p85
    %p87 = scmp.ne.s32.totalorder %s75, %s76
    %p88 = scmp.eq.s32.totalorder %s19, 1
    %p89 = por %p87, %p88
    %p91 = scmp.ne.s32.totalorder %s76, %s90
    %p92 = scmp.eq.s32.totalorder %s19, 0
    %p93 = por %p91, %p92
    %s95 = sadd.s32 %s94, 1
    %p98 = scmp.eq.s32.totalorder %s13, 1
    %p99 = scmp.ne.s32.totalorder %s94, %s96
    %p100 = scmp.eq.s32.totalorder %s13, 0
    %p101 = por %p99, %p100
    %p102 = scmp.ne.s32.totalorder %s94, %s96
    %p103 = scmp.eq.s32.totalorder %s18, 1
    %p104 = por %p102, %p103
    %p105 = scmp.ne.s32.totalorder %s96, %s97
    %p106 = scmp.eq.s32.totalorder %s18, 0
    %p107 = por %p105, %p106
    %p108 = scmp.ne.s32.totalorder %s96, %s97
    %p109 = scmp.eq.s32.totalorder %s19, 1
    %p110 = por %p108, %p109
    %p112 = scmp.ne.s32.totalorder %s97, %s111
    %p113 = scmp.eq.s32.totalorder %s19, 0
    %p114 = por %p112, %p113
    %s116 = sadd.s32 %s115, 1
    %p119 = scmp.eq.s32.totalorder %s13, 1
    %p120 = scmp.ne.s32.totalorder %s115, %s117
    %p121 = scmp.eq.s32.totalorder %s13, 0
    %p122 = por %p120, %p121
    %p123 = scmp.ne.s32.totalorder %s115, %s117
    %p124 = scmp.eq.s32.totalorder %s18, 1
    %p125 = por %p123, %p124
    %p126 = scmp.ne.s32.totalorder %s117, %s118
    %p127 = scmp.eq.s32.totalorder %s18, 0
    %p128 = por %p126, %p127
    %p129 = scmp.ne.s32.totalorder %s117, %s118
    %p130 = scmp.eq.s32.totalorder %s19, 1
    %p131 = por %p129, %p130
    %p133 = scmp.ne.s32.totalorder %s118, %s132
    %p134 = scmp.eq.s32.totalorder %s19, 0
    %p135 = por %p133, %p134
    %s137 = sadd.s32 %s136, 1
    %p140 = scmp.eq.s32.totalorder %s13, 1
    %p141 = scmp.ne.s32.totalorder %s136, %s138
    %p142 = scmp.eq.s32.totalorder %s13, 0
    %p143 = por %p141, %p142
    %p144 = scmp.ne.s32.totalorder %s136, %s138
    %p145 = scmp.eq.s32.totalorder %s18, 1
    %p146 = por %p144, %p145
    %p147 = scmp.ne.s32.totalorder %s138, %s139
    %p148 = scmp.eq.s32.totalorder %s18, 0
    %p149 = por %p147, %p148
    %p150 = scmp.ne.s32.totalorder %s138, %s139
    %p151 = scmp.eq.s32.totalorder %s19, 1
    %p152 = por %p150, %p151
    %p154 = scmp.ne.s32.totalorder %s139, %s153
    %p155 = scmp.eq.s32.totalorder %s19, 0
    %p156 = por %p154, %p155
    %s158 = sadd.s32 %s157, 1
    %p161 = scmp.eq.s32.totalorder %s13, 1
    %p162 = scmp.ne.s32.totalorder %s157, %s159
    %p163 = scmp.eq.s32.totalorder %s13, 0
    %p164 = por %p162, %p163
    %p165 = scmp.ne.s32.totalorder %s157, %s159
    %p166 = scmp.eq.s32.totalorder %s18, 1
    %p167 = por %p165, %p166
    %p168 = scmp.ne.s32.totalorder %s159, %s160
    %p169 = scmp.eq.s32.totalorder %s18, 0
    %p170 = por %p168, %p169
    %p171 = scmp.ne.s32.totalorder %s159, %s160
    %p172 = scmp.eq.s32.totalorder %s19, 1
    %p173 = por %p171, %p172
    %p175 = scmp.ne.s32.totalorder %s160, %s174
    %p176 = scmp.eq.s32.totalorder %s19, 0
    %p177 = por %p175, %p176
    %s179 = sadd.s32 %s178, 1
    %p182 = scmp.eq.s32.totalorder %s13, 1
    %p183 = scmp.ne.s32.totalorder %s178, %s180
    %p184 = scmp.eq.s32.totalorder %s13, 0
    %p185 = por %p183, %p184
    %p186 = scmp.ne.s32.totalorder %s178, %s180
    %p187 = scmp.eq.s32.totalorder %s18, 1
    %p188 = por %p186, %p187
    %p189 = scmp.ne.s32.totalorder %s180, %s181
    %p190 = scmp.eq.s32.totalorder %s18, 0
    %p191 = por %p189, %p190
    %p192 = scmp.ne.s32.totalorder %s180, %s181
    %p193 = scmp.eq.s32.totalorder %s19, 1
    %p194 = por %p192, %p193
    %p196 = scmp.ne.s32.totalorder %s181, %s195
    %p197 = scmp.eq.s32.totalorder %s19, 0
    %p198 = por %p196, %p197
    %p199 = scmp.le.s32.totalorder 1, %s13
    %p200 = scmp.lt.s32.totalorder %s13, 3
    %p201 = pnand %p199, %p200
    %p202 = pneg %p201
    // Predicated region
    $region9: #{encoder_forward.1} parent=5 // pred_check
      _
    $region10: #{encoder_forward.1} parent=5 // pred_check_branch
      %204 = sbr.rel (%p201) target = $region12
    $region11: #{encoder_forward.1} parent=5 // pred_region
      %s205 = ssub.s32 %s13, 1
      // Predicated region
      $region13: #{encoder_forward.1} parent=11 // pred_check
        %p206 = pneg %p86
      $region14: #{encoder_forward.1} parent=11 // pred_check_branch
        %208 = sbr.rel (%p206) target = $region16
      $region15: #{encoder_forward.1} parent=11 // pred_region
        _
      $region16: #{encoder_forward.1} parent=11 // pred_fallthru
        _
      // Predicated region
      $region17: #{encoder_forward.1} parent=11 // pred_check
        %p209 = pneg %p107
      $region18: #{encoder_forward.1} parent=11 // pred_check_branch
        %211 = sbr.rel (%p209) target = $region20
      $region19: #{encoder_forward.1} parent=11 // pred_region
        _
      $region20: #{encoder_forward.1} parent=11 // pred_fallthru
        _
      // Predicated region
      $region21: #{encoder_forward.1} parent=11 // pred_check
        %p212 = pneg %p128
      $region22: #{encoder_forward.1} parent=11 // pred_check_branch
        %214 = sbr.rel (%p212) target = $region24
      $region23: #{encoder_forward.1} parent=11 // pred_region
        _
      $region24: #{encoder_forward.1} parent=11 // pred_fallthru
        _
      // Predicated region
      $region25: #{encoder_forward.1} parent=11 // pred_check
        %p215 = pneg %p149
      $region26: #{encoder_forward.1} parent=11 // pred_check_branch
        %217 = sbr.rel (%p215) target = $region28
      $region27: #{encoder_forward.1} parent=11 // pred_region
        _
      $region28: #{encoder_forward.1} parent=11 // pred_fallthru
        _
      // Predicated region
      $region29: #{encoder_forward.1} parent=11 // pred_check
        %p218 = pneg %p170
      $region30: #{encoder_forward.1} parent=11 // pred_check_branch
        %220 = sbr.rel (%p218) target = $region32
      $region31: #{encoder_forward.1} parent=11 // pred_region
        _
      $region32: #{encoder_forward.1} parent=11 // pred_fallthru
        _
    $region12: #{encoder_forward.1} parent=5 // pred_fallthru
      _
    %p221 = scmp.lt.s32.totalorder %s13, 2
    // Predicated region
    $region33: #{encoder_forward.1} parent=5 // pred_check
      %p222 = pneg %p221
    $region34: #{encoder_forward.1} parent=5 // pred_check_branch
      %224 = sbr.rel (%p222) target = $region36
    $region35: #{encoder_forward.1} parent=5 // pred_region
      // Predicated region
      $region37: #{encoder_forward.1} parent=35 // pred_check
        %p225 = pneg %p33
      $region38: #{encoder_forward.1} parent=35 // pred_check_branch
        %227 = sbr.rel (%p225) target = $region40
      $region39: #{encoder_forward.1} parent=35 // pred_region
        %p228 = scmp.lt.s32.totalorder %s13, 1
        %s229 = scalar_select %p228, %s13, 1
        %s230 = smul.addr %s229, 4
        %s231 = scalar_lea.vmem %s0, %s230
      $region40: #{encoder_forward.1} parent=35 // pred_fallthru
        _
      // Predicated region
      $region41: #{encoder_forward.1} parent=35 // pred_check
        %p232 = pneg %p59
      $region42: #{encoder_forward.1} parent=35 // pred_check_branch
        %234 = sbr.rel (%p232) target = $region44
      $region43: #{encoder_forward.1} parent=35 // pred_region
        %s235 = smul.u32 16, %s13
        %p236 = scmp.lt.s32.totalorder %s235, 31
        %s237 = scalar_select %p236, %s235, 31
        %s238 = smul.addr %s237, 4
        %s239 = scalar_lea.vmem %s1, %s238
        %s240 = smul.u32 16, %s13
      $region44: #{encoder_forward.1} parent=35 // pred_fallthru
        _
    $region36: #{encoder_forward.1} parent=5 // pred_fallthru
      _
    %p241 = scmp.le.s32.totalorder 1, %s13
    %p242 = scmp.lt.s32.totalorder %s13, 3
    %p243 = pnand %p241, %p242
    %p244 = pneg %p243
    // Predicated region
    $region45: #{encoder_forward.1} parent=5 // pred_check
      _
    $region46: #{encoder_forward.1} parent=5 // pred_check_branch
      %246 = sbr.rel (%p243) target = $region48
    $region47: #{encoder_forward.1} parent=5 // pred_region
      %s247 = ssub.s32 %s13, 1
      %p248 = scmp.lt.s32.totalorder %s18, 1
      %s249 = scalar_select %p248, %s18, 1
      %s250 = smul.addr %s249, 4
      %s251 = scalar_lea.vmem %s0, %s250
      %p252 = pneg %p39
      %p253 = pneg %p36
      %s254 = smul.u32 16, %s18
      %p255 = scmp.lt.s32.totalorder %s254, 31
      %s256 = scalar_select %p255, %s254, 31
      %s257 = smul.addr %s256, 4
      %s258 = scalar_lea.vmem %s1, %s257
      %p259 = pneg %p65
      %p260 = pneg %p62
      %p261 = pneg %p86
      %p262 = pneg %p83
      %p263 = pneg %p107
      %p264 = pneg %p104
      %p265 = pneg %p128
      %p266 = pneg %p125
      %p267 = pneg %p149
      %p268 = pneg %p146
      %p269 = pneg %p170
      %p270 = pneg %p167
      %p271 = pneg %p191
      %p272 = pneg %p188
      %p273 = scmp.lt.s32.totalorder %s18, 1
      %s274 = scalar_select %p273, %s18, 1
      %s275 = smul.addr %s274, 4
      %s276 = scalar_lea.vmem %s0, %s275
      %s277 = smul.u32 16, %s18
      %p278 = scmp.lt.s32.totalorder %s277, 31
      %s279 = scalar_select %p278, %s277, 31
      %s280 = smul.addr %s279, 4
      %s281 = scalar_lea.vmem %s1, %s280
      %s282 = smul.u32 16, %s18
      %p284 = scmp.eq.s32.totalorder %s18, 0
      // Predicated region
      $region49: #{encoder_forward.1} parent=47 // pred_check
        %p285 = pneg %p284
      $region50: #{encoder_forward.1} parent=47 // pred_check_branch
        %287 = sbr.rel (%p285) target = $region52
      $region51: #{encoder_forward.1} parent=47 // pred_region
        %288 = vst [vmem:[#allocation2] sm:$0xff] 0.0
      $region52: #{encoder_forward.1} parent=47 // pred_fallthru
        _
      %v289 = vld [vmem:[#allocation2] sm:$0xff]
      %v290 = vld [vmem:[%s276] sm:$0xf]
      %v291 = vld [vmem:[%s281] sm:$0xf]
      %v292 = vld [vmem:[%s281 + $0x4] sm:$0xf]
      %v293 = vld [vmem:[%s281 + $0x8] sm:$0xf]
      %v294 = vld [vmem:[%s281 + $0xc] sm:$0xf]
      %v295 = vld [vmem:[%s281 + $0x10] sm:$0xf]
      %v296 = vld [vmem:[%s281 + $0x14] sm:$0xf]
      %v297 = vld [vmem:[%s281 + $0x18] sm:$0xf]
      %v298 = vld [vmem:[%s281 + $0x1c] sm:$0xf]
      %v299 = vld [vmem:[%s281 + $0x20] sm:$0xf]
      %v300 = vld [vmem:[%s281 + $0x24] sm:$0xf]
      %v301 = vld [vmem:[%s281 + $0x28] sm:$0xf]
      %v302 = vld [vmem:[%s281 + $0x2c] sm:$0xf]
      %v303 = vld [vmem:[%s281 + $0x30] sm:$0xf]
      %v304 = vld [vmem:[%s281 + $0x34] sm:$0xf]
      %v305 = vld [vmem:[%s281 + $0x38] sm:$0xf]
      %v306 = vld [vmem:[%s281 + $0x3c] sm:$0xf]
      %v323 = vunpack.c.l.b16 %v291
      %v324 = vunpack.c.l.b16 %v292
      %v325 = vunpack.c.l.b16 %v293
      %v326 = vunpack.c.l.b16 %v294
      %v327 = vunpack.c.l.b16 %v295
      %v328 = vunpack.c.l.b16 %v296
      %v329 = vunpack.c.l.b16 %v297
      %v330 = vunpack.c.l.b16 %v298
      %v331 = vunpack.c.l.b16 %v299
      %v332 = vunpack.c.l.b16 %v300
      %v333 = vunpack.c.l.b16 %v301
      %v334 = vunpack.c.l.b16 %v302
      %v335 = vunpack.c.l.b16 %v303
      %v336 = vunpack.c.l.b16 %v304
      %v337 = vunpack.c.l.b16 %v305
      %v338 = vunpack.c.l.b16 %v306
      %v339 = vpack.c.b16 %v324, %v323
      %v340 = vpack.c.b16 %v326, %v325
      %v341 = vpack.c.b16 %v328, %v327
      %v342 = vpack.c.b16 %v330, %v329
      %v343 = vpack.c.b16 %v332, %v331
      %v344 = vpack.c.b16 %v334, %v333
      %v345 = vpack.c.b16 %v336, %v335
      %v346 = vpack.c.b16 %v338, %v337
      %355 = vmatprep.subr.bf16.mxu0 0
      %356 = vmatpush1.bf16.msra.mxu0 %v346
      %357 = vmatprep.subr.bf16.mxu0 0
      %358 = vmatpush1.bf16.msra.mxu0 %v345
      %359 = vmatprep.subr.bf16.mxu0 0
      %360 = vmatpush1.bf16.msra.mxu0 %v344
      %361 = vmatprep.subr.bf16.mxu0 0
      %362 = vmatpush1.bf16.msra.mxu0 %v343
      %363 = vmatprep.subr.bf16.mxu0 0
      %364 = vmatpush1.bf16.msra.mxu0 %v342
      %365 = vmatprep.subr.bf16.mxu0 0
      %366 = vmatpush1.bf16.msra.mxu0 %v341
      %367 = vmatprep.subr.bf16.mxu0 0
      %368 = vmatpush1.bf16.msra.mxu0 %v340
      %369 = vmatprep.subr.bf16.mxu0 0
      %370 = vmatpush1.bf16.msra.mxu0 %v339
      %371 = vmatprep.subr.bf16.mxu0 0
      %372 = vmatpush2.bf16.msra.mxu0 0
      %373 = vmatprep.subr.bf16.mxu0 0
      %374 = vmatpush2.bf16.msra.mxu0 0
      %375 = vmatprep.subr.bf16.mxu0 0
      %376 = vmatpush2.bf16.msra.mxu0 0
      %377 = vmatprep.subr.bf16.mxu0 0
      %378 = vmatpush2.bf16.msra.mxu0 0
      %379 = vmatprep.subr.bf16.mxu0 0
      %380 = vmatpush2.bf16.msra.mxu0 0
      %381 = vmatprep.subr.bf16.mxu0 0
      %382 = vmatpush2.bf16.msra.mxu0 0
      %383 = vmatprep.subr.bf16.mxu0 0
      %384 = vmatpush2.bf16.msra.mxu0 0
      %385 = vmatprep.subr.bf16.mxu0 0
      %386 = vmatpush2.bf16.msra.mxu0 0
      %387 = vmatprep.mubr.bf16.mxu0 0
      %388 = vmatmul.mubr.bf16.gmra.mxu0 %v290
      %v389 = vpop.f32.mrf.mxu0
      %v390 = vadd.f32 0.0, %v389
      %v391 = vpop.f32.mrf.mxu0
      %v392 = vpop.f32.mrf.mxu0
      %v393 = vpop.f32.mrf.mxu0
      %394 = vdwg.mxu0
      %v395 = vadd.f32 %v289, %v390
      %396 = vst [vmem:[#allocation2] sm:$0xff] %v395
      %p397 = scmp.eq.s32.totalorder %s18, 1
      // Predicated region
      $region53: #{encoder_forward.1} parent=47 // pred_check
        %p398 = pneg %p397
      $region54: #{encoder_forward.1} parent=47 // pred_check_branch
        %400 = sbr.rel (%p398) target = $region56
      $region55: #{encoder_forward.1} parent=47 // pred_region
        %v401 = vld [vmem:[#allocation2] sm:$0xff]
        %v402 = vld [vmem:[%s2] sm:$0x1]
        %v404 = vlaneseq
        %v405 = vshrl.u32 %v404, 7
        %v406 = vsub.s32 0, %v405
        %v407 = vrot.slane %v402, %v406
        %v409 = vadd.f32 %v401, %v407
        %v410 = vmax.f32 %v409, 0.0
        %vm411 = vcmp.ne.f32.partialorder %v409, %v409
        %v412 = vadd.f32 %v409, 0.0
        %v413 = vand.u32 2147483647, %v409
        %v414 = vsub.f32 0.0, %v413
        %v415 = vmul.f32 %v414, 1.442695
        %v416 = vpow.pop %v415
        %v417 = vadd.f32 %v416, 1.0
        %v418 = vlog2.pop %v417
        %v419 = vmul.f32 %v418, 0.6931472
        %v420 = vmul.f32 -0.5, %v416
        %v421 = vadd.f32 %v420, 1.0
        %v422 = vmul.f32 %v421, %v416
        %v423 = vand.u32 2147483647, %v416
        %vm424 = vcmp.lt.f32.partialorder %v423, 0.0004427343
        %v425 = vsel %vm424, %v422, %v419
        %v426 = vadd.f32 %v410, %v425
        %v427 = vsel %vm411, %v412, %v426
        %v428 = vpack.c.bf16 %v427, %v427
        %v429 = vld [vmem:[%s3] sm:$0xf]
        %v430 = vld [vmem:[%s3 + $0x4] sm:$0xf]
        %v431 = vld [vmem:[%s3 + $0x8] sm:$0xf]
        %v432 = vld [vmem:[%s3 + $0xc] sm:$0xf]
        %v433 = vld [vmem:[%s3 + $0x10] sm:$0xf]
        %v434 = vld [vmem:[%s3 + $0x14] sm:$0xf]
        %v435 = vld [vmem:[%s3 + $0x18] sm:$0xf]
        %v436 = vld [vmem:[%s3 + $0x1c] sm:$0xf]
        %v437 = vld [vmem:[%s3 + $0x20] sm:$0xf]
        %v438 = vld [vmem:[%s3 + $0x24] sm:$0xf]
        %v439 = vld [vmem:[%s3 + $0x28] sm:$0xf]
        %v440 = vld [vmem:[%s3 + $0x2c] sm:$0xf]
        %v441 = vld [vmem:[%s3 + $0x30] sm:$0xf]
        %v442 = vld [vmem:[%s3 + $0x34] sm:$0xf]
        %v443 = vld [vmem:[%s3 + $0x38] sm:$0xf]
        %v444 = vld [vmem:[%s3 + $0x3c] sm:$0xf]
        %v445 = vld [vmem:[%s4] sm:$0x1]
        %v447 = vlaneseq
        %v448 = vshrl.u32 %v447, 7
        %v449 = vsub.s32 0, %v448
        %v450 = vrot.slane %v445, %v449
        %v468 = vunpack.c.l.b16 %v429
        %v469 = vunpack.c.l.b16 %v430
        %v470 = vunpack.c.l.b16 %v431
        %v471 = vunpack.c.l.b16 %v432
        %v472 = vunpack.c.l.b16 %v433
        %v473 = vunpack.c.l.b16 %v434
        %v474 = vunpack.c.l.b16 %v435
        %v475 = vunpack.c.l.b16 %v436
        %v476 = vunpack.c.l.b16 %v437
        %v477 = vunpack.c.l.b16 %v438
        %v478 = vunpack.c.l.b16 %v439
        %v479 = vunpack.c.l.b16 %v440
        %v480 = vunpack.c.l.b16 %v441
        %v481 = vunpack.c.l.b16 %v442
        %v482 = vunpack.c.l.b16 %v443
        %v483 = vunpack.c.l.b16 %v444
        %v484 = vpack.c.b16 %v469, %v468
        %v485 = vpack.c.b16 %v471, %v470
        %v486 = vpack.c.b16 %v473, %v472
        %v487 = vpack.c.b16 %v475, %v474
        %v488 = vpack.c.b16 %v477, %v476
        %v489 = vpack.c.b16 %v479, %v478
        %v490 = vpack.c.b16 %v481, %v480
        %v491 = vpack.c.b16 %v483, %v482
        %500 = vmatprep.subr.bf16.mxu0 0
        %501 = vmatpush1.bf16.msra.mxu0 %v491
        %502 = vmatprep.subr.bf16.mxu0 0
        %503 = vmatpush1.bf16.msra.mxu0 %v490
        %504 = vmatprep.subr.bf16.mxu0 0
        %505 = vmatpush1.bf16.msra.mxu0 %v489
        %506 = vmatprep.subr.bf16.mxu0 0
        %507 = vmatpush1.bf16.msra.mxu0 %v488
        %508 = vmatprep.subr.bf16.mxu0 0
        %509 = vmatpush1.bf16.msra.mxu0 %v487
        %510 = vmatprep.subr.bf16.mxu0 0
        %511 = vmatpush1.bf16.msra.mxu0 %v486
        %512 = vmatprep.subr.bf16.mxu0 0
        %513 = vmatpush1.bf16.msra.mxu0 %v485
        %514 = vmatprep.subr.bf16.mxu0 0
        %515 = vmatpush1.bf16.msra.mxu0 %v484
        %516 = vmatprep.subr.bf16.mxu0 0
        %517 = vmatpush2.bf16.msra.mxu0 0
        %518 = vmatprep.subr.bf16.mxu0 0
        %519 = vmatpush2.bf16.msra.mxu0 0
        %520 = vmatprep.subr.bf16.mxu0 0
        %521 = vmatpush2.bf16.msra.mxu0 0
        %522 = vmatprep.subr.bf16.mxu0 0
        %523 = vmatpush2.bf16.msra.mxu0 0
        %524 = vmatprep.subr.bf16.mxu0 0
        %525 = vmatpush2.bf16.msra.mxu0 0
        %526 = vmatprep.subr.bf16.mxu0 0
        %527 = vmatpush2.bf16.msra.mxu0 0
        %528 = vmatprep.subr.bf16.mxu0 0
        %529 = vmatpush2.bf16.msra.mxu0 0
        %530 = vmatprep.subr.bf16.mxu0 0
        %531 = vmatpush2.bf16.msra.mxu0 0
        %532 = vmatprep.mubr.bf16.mxu0 0
        %533 = vmatmul.mubr.bf16.gmra.mxu0 %v428
        %v534 = vpop.f32.mrf.mxu0
        %v535 = vadd.f32 %v450, %v534
        %v536 = vpop.f32.mrf.mxu0
        %v537 = vpop.f32.mrf.mxu0
        %v538 = vpop.f32.mrf.mxu0
        %539 = vdwg.mxu0
        %v540 = vmax.f32 %v535, 0.0
        %vm541 = vcmp.ne.f32.partialorder %v535, %v535
        %v542 = vadd.f32 %v535, 0.0
        %v543 = vand.u32 2147483647, %v535
        %v544 = vsub.f32 0.0, %v543
        %v545 = vmul.f32 %v544, 1.442695
        %v546 = vpow.pop %v545
        %v547 = vadd.f32 %v546, 1.0
        %v548 = vlog2.pop %v547
        %v549 = vmul.f32 %v548, 0.6931472
        %v550 = vmul.f32 -0.5, %v546
        %v551 = vadd.f32 %v550, 1.0
        %v552 = vmul.f32 %v551, %v546
        %v553 = vand.u32 2147483647, %v546
        %vm554 = vcmp.lt.f32.partialorder %v553, 0.0004427343
        %v555 = vsel %vm554, %v552, %v549
        %v556 = vadd.f32 %v540, %v555
        %v557 = vsel %vm541, %v542, %v556
        %v558 = vpack.c.bf16 %v557, %v557
        %v559 = vld [vmem:[%s5] sm:$0xf]
        %v560 = vld [vmem:[%s5 + $0x4] sm:$0xf]
        %v561 = vld [vmem:[%s5 + $0x8] sm:$0xf]
        %v562 = vld [vmem:[%s5 + $0xc] sm:$0xf]
        %v563 = vld [vmem:[%s5 + $0x10] sm:$0xf]
        %v564 = vld [vmem:[%s5 + $0x14] sm:$0xf]
        %v565 = vld [vmem:[%s5 + $0x18] sm:$0xf]
        %v566 = vld [vmem:[%s5 + $0x1c] sm:$0xf]
        %v567 = vld [vmem:[%s5 + $0x20] sm:$0xf]
        %v568 = vld [vmem:[%s5 + $0x24] sm:$0xf]
        %v569 = vld [vmem:[%s5 + $0x28] sm:$0xf]
        %v570 = vld [vmem:[%s5 + $0x2c] sm:$0xf]
        %v571 = vld [vmem:[%s5 + $0x30] sm:$0xf]
        %v572 = vld [vmem:[%s5 + $0x34] sm:$0xf]
        %v573 = vld [vmem:[%s5 + $0x38] sm:$0xf]
        %v574 = vld [vmem:[%s5 + $0x3c] sm:$0xf]
        %v575 = vld [vmem:[%s6] sm:$0x1]
        %v577 = vlaneseq
        %v578 = vshrl.u32 %v577, 7
        %v579 = vsub.s32 0, %v578
        %v580 = vrot.slane %v575, %v579
        %v598 = vunpack.c.l.b16 %v559
        %v599 = vunpack.c.l.b16 %v560
        %v600 = vunpack.c.l.b16 %v561
        %v601 = vunpack.c.l.b16 %v562
        %v602 = vunpack.c.l.b16 %v563
        %v603 = vunpack.c.l.b16 %v564
        %v604 = vunpack.c.l.b16 %v565
        %v605 = vunpack.c.l.b16 %v566
        %v606 = vunpack.c.l.b16 %v567
        %v607 = vunpack.c.l.b16 %v568
        %v608 = vunpack.c.l.b16 %v569
        %v609 = vunpack.c.l.b16 %v570
        %v610 = vunpack.c.l.b16 %v571
        %v611 = vunpack.c.l.b16 %v572
        %v612 = vunpack.c.l.b16 %v573
        %v613 = vunpack.c.l.b16 %v574
        %v614 = vpack.c.b16 %v599, %v598
        %v615 = vpack.c.b16 %v601, %v600
        %v616 = vpack.c.b16 %v603, %v602
        %v617 = vpack.c.b16 %v605, %v604
        %v618 = vpack.c.b16 %v607, %v606
        %v619 = vpack.c.b16 %v609, %v608
        %v620 = vpack.c.b16 %v611, %v610
        %v621 = vpack.c.b16 %v613, %v612
        %630 = vmatprep.subr.bf16.mxu0 0
        %631 = vmatpush1.bf16.msra.mxu0 %v621
        %632 = vmatprep.subr.bf16.mxu0 0
        %633 = vmatpush1.bf16.msra.mxu0 %v620
        %634 = vmatprep.subr.bf16.mxu0 0
        %635 = vmatpush1.bf16.msra.mxu0 %v619
        %636 = vmatprep.subr.bf16.mxu0 0
        %637 = vmatpush1.bf16.msra.mxu0 %v618
        %638 = vmatprep.subr.bf16.mxu0 0
        %639 = vmatpush1.bf16.msra.mxu0 %v617
        %640 = vmatprep.subr.bf16.mxu0 0
        %641 = vmatpush1.bf16.msra.mxu0 %v616
        %642 = vmatprep.subr.bf16.mxu0 0
        %643 = vmatpush1.bf16.msra.mxu0 %v615
        %644 = vmatprep.subr.bf16.mxu0 0
        %645 = vmatpush1.bf16.msra.mxu0 %v614
        %646 = vmatprep.subr.bf16.mxu0 0
        %647 = vmatpush2.bf16.msra.mxu0 0
        %648 = vmatprep.subr.bf16.mxu0 0
        %649 = vmatpush2.bf16.msra.mxu0 0
        %650 = vmatprep.subr.bf16.mxu0 0
        %651 = vmatpush2.bf16.msra.mxu0 0
        %652 = vmatprep.subr.bf16.mxu0 0
        %653 = vmatpush2.bf16.msra.mxu0 0
        %654 = vmatprep.subr.bf16.mxu0 0
        %655 = vmatpush2.bf16.msra.mxu0 0
        %656 = vmatprep.subr.bf16.mxu0 0
        %657 = vmatpush2.bf16.msra.mxu0 0
        %658 = vmatprep.subr.bf16.mxu0 0
        %659 = vmatpush2.bf16.msra.mxu0 0
        %660 = vmatprep.subr.bf16.mxu0 0
        %661 = vmatpush2.bf16.msra.mxu0 0
        %662 = vmatprep.mubr.bf16.mxu0 0
        %663 = vmatmul.mubr.bf16.gmra.mxu0 %v558
        %v664 = vpop.f32.mrf.mxu0
        %v665 = vadd.f32 %v580, %v664
        %v666 = vpop.f32.mrf.mxu0
        %v667 = vpop.f32.mrf.mxu0
        %v668 = vpop.f32.mrf.mxu0
        %669 = vdwg.mxu0
        %v670 = vrot.slane %v665, 4
        %v671 = vadd.f32 %v665, %v670
        %v672 = vrot.slane %v671, 2
        %v673 = vadd.f32 %v671, %v672
        %v674 = vrot.slane %v673, 1
        %v675 = vadd.f32 %v673, %v674
        %v676 = vrcp.pop 8.0
        %v677 = vmul.f32 %v675, %v676
        %v678 = vmul.f32 %v665, %v665
        %v679 = vrot.slane %v678, 4
        %v680 = vadd.f32 %v678, %v679
        %v681 = vrot.slane %v680, 2
        %v682 = vadd.f32 %v680, %v681
        %v683 = vrot.slane %v682, 1
        %v684 = vadd.f32 %v682, %v683
        %v685 = vmul.f32 %v684, %v676
        %v686 = vmul.f32 %v677, %v677
        %v687 = vsub.f32 %v685, %v686
        %v688 = vmax.f32 %v687, 0.0
        %v689 = vsub.f32 %v665, %v677
        %v690 = vadd.f32 %v688, 1e-05
        %v691 = vrsqrt.pop %v690
        %v692 = vmul.f32 %v689, %v691
        %v693 = vlaneseq
        %v694 = vand.u32 %v693, 127
        %vm695 = vcmp.lt.s32.totalorder %v694, 32
        %v696 = vmul.f32 %v692, 0.5
        %v697 = vmul.f32 %v696, 1.442695
        %v698 = vpow.pop %v697
        %v699 = vsel %vm695, %v692, %v698
        %700 = vst [vmem:[%s7] sm:$0xff] %v699
      $region56: #{encoder_forward.1} parent=47 // pred_fallthru
        _
      // Predicated region
      $region57: #{encoder_forward.1} parent=47 // pred_check
        %p701 = pneg %p188
      $region58: #{encoder_forward.1} parent=47 // pred_check_branch
        %703 = sbr.rel (%p701) target = $region60
      $region59: #{encoder_forward.1} parent=47 // pred_region
        _
      $region60: #{encoder_forward.1} parent=47 // pred_fallthru
        _
      // Predicated region
      $region61: #{encoder_forward.1} parent=47 // pred_check
        %p704 = pneg %p188
      $region62: #{encoder_forward.1} parent=47 // pred_check_branch
        %706 = sbr.rel (%p704) target = $region64
      $region63: #{encoder_forward.1} parent=47 // pred_region
        _
      $region64: #{encoder_forward.1} parent=47 // pred_fallthru
        _
    $region48: #{encoder_forward.1} parent=5 // pred_fallthru
      _
    %p707 = scmp.le.s32.totalorder 2, %s13
    // Predicated region
    $region65: #{encoder_forward.1} parent=5 // pred_check
      %p708 = pneg %p707
    $region66: #{encoder_forward.1} parent=5 // pred_check_branch
      %710 = sbr.rel (%p708) target = $region68
    $region67: #{encoder_forward.1} parent=5 // pred_region
      %s711 = ssub.s32 %s13, 2
    $region68: #{encoder_forward.1} parent=5 // pred_fallthru
      _
  $region6: #{encoder_forward.1} parent=0 // loop_footer
    %s17 = sadd.s32 1, %s13
  $region7: #{encoder_forward.1} parent=0 // loop_footer_branch
    %12 = sbr.rel target = $region3
  $region8: #{encoder_forward.1} parent=0 // loop_exit
    _

</llo_original>
